<compile_context>
chip_gen: v5e
topology: v5e:2x2
jax: 0.10.0
libtpu: 0.0.40
codegen_flags: <defaults>
</compile_context>

<pallas_src>
import functools

import jax
import jax.numpy as jnp
from jax.experimental import pallas as pl
from jax.experimental.pallas import tpu as pltpu


def _glu_kernel(x_ref, w_ref, b_ref, o_ref):
    # x_ref: (Cin, tn)        spatial tile, lanes = pixels
    # w_ref: (2*Cout, Cin)    stacked [linear; gate] 1x1-conv weights
    # b_ref: (2*Cout, 1)      stacked bias (broadcast over lanes)
    # o_ref: (Cout, tn)
    x = x_ref[...]
    y = jnp.dot(w_ref[...], x, preferred_element_type=jnp.float32)  # (2*Cout, tn)
    y = y + b_ref[...]
    cout = o_ref.shape[0]
    a = y[:cout, :]
    g = y[cout:, :]
    o_ref[...] = (a * jax.nn.sigmoid(g)).astype(o_ref.dtype)


@functools.partial(jax.jit, static_argnames=("out_channels", "hw_tile_target"))
def nn_glu_forward(x, conv_w, conv_b, *, out_channels, hw_tile_target=2048):
    """x: (N, Cin, H, W); conv_w: (2*Cout, Cin, 1, 1); conv_b: (2*Cout,)."""
    N, Cin, H, W = x.shape
    Cout = out_channels
    HW = H * W

    # Free (metadata-only) reshapes: no HBM transposes.
    x_flat = x.reshape(N, Cin, HW)              # (N, Cin, HW)
    w = conv_w.reshape(2 * Cout, Cin)           # LHS of the fused matmul
    b = conv_b.reshape(2 * Cout, 1)             # broadcast over lane axis

    # Spatial tile: full HW if small, else a 128-aligned tile up to the target.
    if HW <= hw_tile_target:
        tn = HW
    else:
        tn = max(128, (hw_tile_target // 128) * 128)
    grid_hw = pl.cdiv(HW, tn)

    # VMEM budget: double-buffered x/out tiles + resident weights/bias, with
    # generous headroom; capped well under v7x's 64 MiB physical VMEM.
    itemsize = jnp.dtype(x.dtype).itemsize
    need = (2 * Cin * tn + 2 * Cout * tn            # x / out double buffers
            + 2 * (2 * Cout) * Cin                  # weights
            + 2 * (2 * Cout)) * itemsize            # bias
    vmem_limit = int(min(max(4 * need + (2 << 20), 16 << 20), 40 << 20))

    out_flat = pl.pallas_call(
        _glu_kernel,
        out_shape=jax.ShapeDtypeStruct((N, Cout, HW), x.dtype),
        grid_spec=pltpu.PrefetchScalarGridSpec(
            num_scalar_prefetch=0,
            grid=(N, grid_hw),
            in_specs=[
                pl.BlockSpec((None, Cin, tn), lambda n, j: (n, 0, j)),
                pl.BlockSpec((2 * Cout, Cin), lambda n, j: (0, 0)),
                pl.BlockSpec((2 * Cout, 1), lambda n, j: (0, 0)),
            ],
            out_specs=pl.BlockSpec((None, Cout, tn), lambda n, j: (n, 0, j)),
        ),
        compiler_params=pltpu.CompilerParams(
            dimension_semantics=("parallel", "parallel"),
            vmem_limit_bytes=vmem_limit,
        ),
    )(x_flat, w, b)

    return out_flat.reshape(N, Cout, H, W)


def _reference(x, conv_w, conv_b, out_channels):
    # Pure-JAX reference of the PyTorch forward (1x1 conv + GLU).
    w2d = conv_w.reshape(conv_w.shape[0], conv_w.shape[1])  # (2*Cout, Cin)
    y = jnp.einsum("nchw,oc->nohw", x, w2d) + conv_b[None, :, None, None]
    return y[:, :out_channels] * jax.nn.sigmoid(y[:, out_channels:])


if __name__ == "__main__":
    key = jax.random.PRNGKey(0)
    k_x, k_w, k_b = jax.random.split(key, 3)

    N, Cin, H, W = 2, 4, 16, 16
    Cout = 8  # module's out_channels; conv produces 2*Cout channels

    x = jax.random.normal(k_x, (N, Cin, H, W), dtype=jnp.float32)
    conv_w = (jax.random.normal(k_w, (2 * Cout, Cin, 1, 1), dtype=jnp.float32)
              * (1.0 / jnp.sqrt(Cin)))
    conv_b = jax.random.normal(k_b, (2 * Cout,), dtype=jnp.float32) * 0.1

    out = nn_glu_forward(x, conv_w, conv_b, out_channels=Cout)
    out = jax.block_until_ready(out)

    ref = _reference(x, conv_w, conv_b, Cout)
    assert out.shape == (N, Cout, H, W), out.shape
    assert jnp.allclose(out, ref, atol=1e-5, rtol=1e-5), "mismatch vs reference"

    print("KERNEL_OK")
</pallas_src>

<mosaic_0001>
module attributes {stable_mosaic.version = 11 : i64} {
  func.func @_glu_kernel(%arg0: i32, %arg1: i32, %arg2: memref<1x4x256xf32, #tpu.memory_space<vmem>>, %arg3: memref<16x4xf32, #tpu.memory_space<vmem>>, %arg4: memref<16x1xf32, #tpu.memory_space<vmem>>, %arg5: memref<1x8x256xf32, #tpu.memory_space<vmem>>) attributes {dimension_semantics = [#tpu.dimension_semantics<parallel>, #tpu.dimension_semantics<parallel>], iteration_bounds = array<i64: 2, 1>, scalar_prefetch = 0 : i64, scratch_operands = 0 : i64, tpu.core_type = #tpu.core_type<tc>, window_params = [{transform_indices = @transform_0, window_bounds = array<i64: 1, 4, 256>}, {pipeline_mode = #tpu.pipeline_mode<synchronous>, transform_indices = @transform_1, window_bounds = array<i64: 16, 4>}, {pipeline_mode = #tpu.pipeline_mode<synchronous>, transform_indices = @transform_2, window_bounds = array<i64: 16, 1>}, {transform_indices = @transform_3, window_bounds = array<i64: 1, 8, 256>}]} {
    %c0 = arith.constant 0 : index
    %c0_0 = arith.constant 0 : index
    %c0_1 = arith.constant 0 : index
    %0 = vector.load %arg2[%c0, %c0_0, %c0_1] : memref<1x4x256xf32, #tpu.memory_space<vmem>>, vector<1x4x256xf32>
    %1 = vector.shape_cast %0 : vector<1x4x256xf32> to vector<4x256xf32>
    %c0_2 = arith.constant 0 : index
    %c0_3 = arith.constant 0 : index
    %2 = vector.load %arg3[%c0_2, %c0_3] : memref<16x4xf32, #tpu.memory_space<vmem>>, vector<16x4xf32>
    %cst = arith.constant dense<0.000000e+00> : vector<16x256xf32>
    %3 = tpu.matmul %2, %1, %cst {dimension_numbers = #tpu.dot_dimension_numbers<[1], [0], [0], [1], [0, 0, 1, 1], [], []>} : vector<16x4xf32>, vector<4x256xf32>, vector<16x256xf32> -> vector<16x256xf32>
    %c0_4 = arith.constant 0 : index
    %c0_5 = arith.constant 0 : index
    %4 = vector.load %arg4[%c0_4, %c0_5] : memref<16x1xf32, #tpu.memory_space<vmem>>, vector<16x1xf32>
    %5 = vector.broadcast %4 : vector<16x1xf32> to vector<16x256xf32>
    %6 = arith.addf %3, %5 : vector<16x256xf32>
    %7 = vector.extract_strided_slice %6 {offsets = [0, 0], sizes = [8, 256], strides = [1, 1]} : vector<16x256xf32> to vector<8x256xf32>
    %8 = vector.extract_strided_slice %6 {offsets = [8, 0], sizes = [8, 256], strides = [1, 1]} : vector<16x256xf32> to vector<8x256xf32>
    %9 = arith.negf %8 : vector<8x256xf32>
    %10 = math.exp %9 : vector<8x256xf32>
    %cst_6 = arith.constant 1.000000e+00 : f32
    %11 = vector.broadcast %cst_6 : f32 to vector<8x256xf32>
    %12 = arith.addf %11, %10 : vector<8x256xf32>
    %13 = arith.divf %11, %12 : vector<8x256xf32>
    %14 = arith.mulf %7, %13 : vector<8x256xf32>
    %c0_7 = arith.constant 0 : index
    %c0_8 = arith.constant 0 : index
    %c0_9 = arith.constant 0 : index
    %15 = vector.load %arg5[%c0_7, %c0_8, %c0_9] : memref<1x8x256xf32, #tpu.memory_space<vmem>>, vector<1x8x256xf32>
    %16 = vector.shape_cast %15 : vector<1x8x256xf32> to vector<8x256xf32>
    %17 = vector.shape_cast %14 : vector<8x256xf32> to vector<1x8x256xf32>
    tpu.vector_store %arg5[%c0_7, %c0_8, %c0_9], %17 {strides = array<i32>} : memref<1x8x256xf32, #tpu.memory_space<vmem>>, vector<1x8x256xf32>,
    return
  }
  func.func @transform_0(%arg0: i32, %arg1: i32) -> (i32, i32, i32) {
    %c0_i32 = arith.constant 0 : i32
    %c0_i32_0 = arith.constant 0 : i32
    return %arg0, %c0_i32, %arg1 : i32, i32, i32
  }
  func.func @transform_1(%arg0: i32, %arg1: i32) -> (i32, i32) {
    %c0_i32 = arith.constant 0 : i32
    %c0_i32_0 = arith.constant 0 : i32
    %c0_i32_1 = arith.constant 0 : i32
    return %c0_i32, %c0_i32_0 : i32, i32
  }
  func.func @transform_2(%arg0: i32, %arg1: i32) -> (i32, i32) {
    %c0_i32 = arith.constant 0 : i32
    %c0_i32_0 = arith.constant 0 : i32
    %c0_i32_1 = arith.constant 0 : i32
    return %c0_i32, %c0_i32_0 : i32, i32
  }
  func.func @transform_3(%arg0: i32, %arg1: i32) -> (i32, i32, i32) {
    %c0_i32 = arith.constant 0 : i32
    %c0_i32_0 = arith.constant 0 : i32
    return %arg0, %c0_i32, %arg1 : i32, i32, i32
  }
}

</mosaic_0001>

<llo_original>
// kernel: nn_glu_forward.1
$region0: #{nn_glu_forward.1}
  #allocation0 [shape = 'u32[]', space=smem, size = 0x4, offset = 0x4, fixed_abs, tag = 'smem constant byte address 0x4 - core index']
  #allocation1 [shape = 'u32[72,128]{1,0:T(1,128)}', space=vmem, size = 0x9000, scoped, tag = 'internal scratch']
  %s0 = inlined_call_operand.vmem [shape: f32[2,4,256], index: 0, kind: input, shape index: {}]
  %s1 = inlined_call_operand.vmem [shape: f32[16,4], index: 1, kind: input, shape index: {}]
  %s2 = inlined_call_operand.vmem [shape: f32[16,1], index: 2, kind: input, shape index: {}]
  %s3 = inlined_call_operand.vmem [shape: f32[2,8,256], index: 3, kind: output, shape index: {}]
  %s4 = sld [smem:[#allocation0]]
  $region45: #{nn_glu_forward.1} parent=0
    _
  %s6 = ssub.s32 1, %s4
  %s7 = scalar_select 0, %s6, %s4
  loop: start=0, step=1, limit=4
  $region2: #{nn_glu_forward.1} parent=0 // loop_pre_header
    _
  $region3: #{nn_glu_forward.1} parent=0 // loop_header
    %s9 = sphi 0, %s13
    %p10 = scmp.ge.s32.totalorder %s9, 4
    %s16 = sphi 0, %s28
    %s17 = sphi 0, %s24
    %s18 = sphi 0, %s16
    %s19 = sphi 0, %s17
    %s20 = sphi 0, %s18
    %s21 = sphi 0, %s19
    %s33 = sphi 0, %s35
    %s36 = sphi 0, %s33
    %s37 = sphi 0, %s36
    %s53 = sphi 0, %s37
    %s57 = sphi 0, %s57
    %s59 = sphi 0, %s57
    %s60 = sphi 0, %s59
    %s74 = sphi 0, %s60
    %s78 = sphi 0, %s78
    %s80 = sphi 0, %s78
    %s81 = sphi 0, %s80
    %s95 = sphi 0, %s81
    %s103 = sphi 0, %s105
    %s106 = sphi 0, %s103
    %s107 = sphi 0, %s106
    %s123 = sphi 0, %s107
  $region4: #{nn_glu_forward.1} parent=0 // loop_header_branch
    %12 = sbr.rel (%p10) target = $region8
  $region5: #{nn_glu_forward.1} parent=0 // loop_body
    %s14 = ssub.s32 %s9, 1
    %s15 = ssub.s32 %s9, 2
    %s22 = sadd.s32 1, %s17
    %p23 = scmp.ge.s32.totalorder %s22, 1
    %s24 = scalar_select %p23, 0, %s22
    %s25 = sadd.s32 1, %s16
    %s26 = scalar_select %p23, %s25, %s16
    %p27 = scmp.ge.s32.totalorder %s26, 2
    %s28 = scalar_select %p27, 0, %s26
    %s29 = ssub.s32 %s16, %s28
    %s30 = ssub.s32 %s17, %s24
    %s31 = sor.u32 %s29, %s30
    %p32 = scmp.eq.s32.totalorder %s31, 0
    %s34 = sadd.s32 %s33, 1
    %s35 = scalar_select %p32, %s33, %s34
    %p38 = pneg %p32
    %p39 = scmp.eq.s32.totalorder %s9, 1
    %p40 = por %p38, %p39
    %p41 = scmp.ne.s32.totalorder %s33, %s36
    %p42 = scmp.eq.s32.totalorder %s9, 0
    %p43 = por %p41, %p42
    %p44 = scmp.ne.s32.totalorder %s33, %s36
    %p45 = scmp.eq.s32.totalorder %s14, 1
    %p46 = por %p44, %p45
    %p47 = scmp.ne.s32.totalorder %s36, %s37
    %p48 = scmp.eq.s32.totalorder %s14, 0
    %p49 = por %p47, %p48
    %p50 = scmp.ne.s32.totalorder %s36, %s37
    %p51 = scmp.eq.s32.totalorder %s15, 1
    %p52 = por %p50, %p51
    %p54 = scmp.ne.s32.totalorder %s37, %s53
    %p55 = scmp.eq.s32.totalorder %s15, 0
    %p56 = por %p54, %p55
    %s58 = sadd.s32 %s57, 1
    %p61 = scmp.eq.s32.totalorder %s9, 1
    %p62 = scmp.ne.s32.totalorder %s57, %s59
    %p63 = scmp.eq.s32.totalorder %s9, 0
    %p64 = por %p62, %p63
    %p65 = scmp.ne.s32.totalorder %s57, %s59
    %p66 = scmp.eq.s32.totalorder %s14, 1
    %p67 = por %p65, %p66
    %p68 = scmp.ne.s32.totalorder %s59, %s60
    %p69 = scmp.eq.s32.totalorder %s14, 0
    %p70 = por %p68, %p69
    %p71 = scmp.ne.s32.totalorder %s59, %s60
    %p72 = scmp.eq.s32.totalorder %s15, 1
    %p73 = por %p71, %p72
    %p75 = scmp.ne.s32.totalorder %s60, %s74
    %p76 = scmp.eq.s32.totalorder %s15, 0
    %p77 = por %p75, %p76
    %s79 = sadd.s32 %s78, 1
    %p82 = scmp.eq.s32.totalorder %s9, 1
    %p83 = scmp.ne.s32.totalorder %s78, %s80
    %p84 = scmp.eq.s32.totalorder %s9, 0
    %p85 = por %p83, %p84
    %p86 = scmp.ne.s32.totalorder %s78, %s80
    %p87 = scmp.eq.s32.totalorder %s14, 1
    %p88 = por %p86, %p87
    %p89 = scmp.ne.s32.totalorder %s80, %s81
    %p90 = scmp.eq.s32.totalorder %s14, 0
    %p91 = por %p89, %p90
    %p92 = scmp.ne.s32.totalorder %s80, %s81
    %p93 = scmp.eq.s32.totalorder %s15, 1
    %p94 = por %p92, %p93
    %p96 = scmp.ne.s32.totalorder %s81, %s95
    %p97 = scmp.eq.s32.totalorder %s15, 0
    %p98 = por %p96, %p97
    %s99 = ssub.s32 %s16, %s28
    %s100 = ssub.s32 %s17, %s24
    %s101 = sor.u32 %s99, %s100
    %p102 = scmp.eq.s32.totalorder %s101, 0
    %s104 = sadd.s32 %s103, 1
    %s105 = scalar_select %p102, %s103, %s104
    %p108 = pneg %p102
    %p109 = scmp.eq.s32.totalorder %s9, 1
    %p110 = por %p108, %p109
    %p111 = scmp.ne.s32.totalorder %s103, %s106
    %p112 = scmp.eq.s32.totalorder %s9, 0
    %p113 = por %p111, %p112
    %p114 = scmp.ne.s32.totalorder %s103, %s106
    %p115 = scmp.eq.s32.totalorder %s14, 1
    %p116 = por %p114, %p115
    %p117 = scmp.ne.s32.totalorder %s106, %s107
    %p118 = scmp.eq.s32.totalorder %s14, 0
    %p119 = por %p117, %p118
    %p120 = scmp.ne.s32.totalorder %s106, %s107
    %p121 = scmp.eq.s32.totalorder %s15, 1
    %p122 = por %p120, %p121
    %p124 = scmp.ne.s32.totalorder %s107, %s123
    %p125 = scmp.eq.s32.totalorder %s15, 0
    %p126 = por %p124, %p125
    %p127 = scmp.le.s32.totalorder 1, %s9
    %p128 = scmp.lt.s32.totalorder %s9, 3
    %p129 = pnand %p127, %p128
    %p130 = pneg %p129
    // Predicated region
    $region9: #{nn_glu_forward.1} parent=5 // pred_check
      _
    $region10: #{nn_glu_forward.1} parent=5 // pred_check_branch
      %132 = sbr.rel (%p129) target = $region12
    $region11: #{nn_glu_forward.1} parent=5 // pred_region
      %s133 = ssub.s32 %s9, 1
      // Predicated region
      $region13: #{nn_glu_forward.1} parent=11 // pred_check
        %p134 = pneg %p70
      $region14: #{nn_glu_forward.1} parent=11 // pred_check_branch
        %136 = sbr.rel (%p134) target = $region16
      $region15: #{nn_glu_forward.1} parent=11 // pred_region
        _
      $region16: #{nn_glu_forward.1} parent=11 // pred_fallthru
        _
      // Predicated region
      $region17: #{nn_glu_forward.1} parent=11 // pred_check
        %p137 = pneg %p91
      $region18: #{nn_glu_forward.1} parent=11 // pred_check_branch
        %139 = sbr.rel (%p137) target = $region20
      $region19: #{nn_glu_forward.1} parent=11 // pred_region
        _
      $region20: #{nn_glu_forward.1} parent=11 // pred_fallthru
        _
    $region12: #{nn_glu_forward.1} parent=5 // pred_fallthru
      _
    %p140 = scmp.lt.s32.totalorder %s9, 2
    // Predicated region
    $region21: #{nn_glu_forward.1} parent=5 // pred_check
      %p141 = pneg %p140
    $region22: #{nn_glu_forward.1} parent=5 // pred_check_branch
      %143 = sbr.rel (%p141) target = $region24
    $region23: #{nn_glu_forward.1} parent=5 // pred_region
      // Predicated region
      $region25: #{nn_glu_forward.1} parent=23 // pred_check
        %p144 = pneg %p43
      $region26: #{nn_glu_forward.1} parent=23 // pred_check_branch
        %146 = sbr.rel (%p144) target = $region28
      $region27: #{nn_glu_forward.1} parent=23 // pred_region
        %s147 = smul.u32 2, %s17
        %p148 = scmp.lt.s32.totalorder %s16, 1
        %s149 = scalar_select %p148, %s16, 1
        %p150 = scmp.lt.s32.totalorder %s147, 1
        %s151 = scalar_select %p150, %s147, 1
        %s152 = smul.addr %s149, 2
        %s153 = sadd.s32 %s151, %s152
        %s154 = smul.addr %s153, 4
        %s155 = scalar_lea.vmem %s0, %s154
        %s156 = smul.u32 2, %s17
      $region28: #{nn_glu_forward.1} parent=23 // pred_fallthru
        _
    $region24: #{nn_glu_forward.1} parent=5 // pred_fallthru
      _
    %p157 = scmp.le.s32.totalorder 1, %s9
    %p158 = scmp.lt.s32.totalorder %s9, 3
    %p159 = pnand %p157, %p158
    %p160 = pneg %p159
    // Predicated region
    $region29: #{nn_glu_forward.1} parent=5 // pred_check
      _
    $region30: #{nn_glu_forward.1} parent=5 // pred_check_branch
      %162 = sbr.rel (%p159) target = $region32
    $region31: #{nn_glu_forward.1} parent=5 // pred_region
      %s163 = ssub.s32 %s9, 1
      %s164 = smul.u32 2, %s19
      %p165 = scmp.lt.s32.totalorder %s18, 1
      %s166 = scalar_select %p165, %s18, 1
      %p167 = scmp.lt.s32.totalorder %s164, 1
      %s168 = scalar_select %p167, %s164, 1
      %s169 = smul.addr %s166, 2
      %s170 = sadd.s32 %s168, %s169
      %s171 = smul.addr %s170, 4
      %s172 = scalar_lea.vmem %s0, %s171
      %p173 = pneg %p49
      %p174 = pneg %p46
      %p175 = pneg %p70
      %p176 = pneg %p67
      %p177 = pneg %p91
      %p178 = pneg %p88
      %p179 = pneg %p119
      %p180 = pneg %p116
      %s181 = smul.u32 2, %s19
      %p182 = scmp.lt.s32.totalorder %s18, 1
      %s183 = scalar_select %p182, %s18, 1
      %p184 = scmp.lt.s32.totalorder %s181, 1
      %s185 = scalar_select %p184, %s181, 1
      %s186 = smul.addr %s183, 2
      %s187 = sadd.s32 %s185, %s186
      %s188 = smul.addr %s187, 8
      %s189 = scalar_lea.vmem %s3, %s188
      %s190 = smul.u32 2, %s19
      %p191 = scmp.lt.s32.totalorder %s18, 1
      %s192 = scalar_select %p191, %s18, 1
      %p193 = scmp.lt.s32.totalorder %s190, 1
      %s194 = scalar_select %p193, %s190, 1
      %s195 = smul.addr %s192, 2
      %s196 = sadd.s32 %s194, %s195
      %s197 = smul.addr %s196, 4
      %s198 = scalar_lea.vmem %s0, %s197
      %s199 = smul.u32 2, %s19
      %s200 = smul.u32 2, %s19
      %p201 = scmp.lt.s32.totalorder %s18, 1
      %s202 = scalar_select %p201, %s18, 1
      %p203 = scmp.lt.s32.totalorder %s200, 1
      %s204 = scalar_select %p203, %s200, 1
      %s205 = smul.addr %s202, 2
      %s206 = sadd.s32 %s204, %s205
      %s207 = smul.addr %s206, 8
      %s208 = scalar_lea.vmem %s3, %s207
      %s209 = smul.u32 2, %s19
      %v210 = vld [vmem:[%s198] sm:$0xff]
      %v211 = vld [vmem:[%s1] sm:$0xff]
      %v212 = vld [vmem:[%s1 + $0x8] sm:$0xff]
      %v213 = vld [vmem:[%s2] sm:$0xff]
      %v214 = vld [vmem:[%s2 + $0x8] sm:$0xff]
      %216 = vset.pattern.permute.xlu0 0
      %217 = vperm.xlu0 %216, %v213
      %v218 = vpop.permute.xlu0 %217
      %221 = vset.pattern.permute.xlu0 0
      %222 = vperm.xlu0 %221, %v214
      %v223 = vpop.permute.xlu0 %222
      %226 = vst [vmem:[#allocation1] ss:$2 sm:$0xff] %v210
      %v227 = vld.sshfl [vmem:[#allocation1] sm:$0xff pattern:$0x75316420]
      %v228 = vld.sshfl [vmem:[#allocation1 + $0x8] sm:$0xff pattern:$0x75316420]
      %vm229 = vcmask 31744
      %v231 = vsel %vm229, %v211, 0
      %v234 = vsel %vm229, %v212, 0
      %vm236 = vcmask 1043456
      %v237 = vsel %vm236, %v227, 0
      %v239 = vsel %vm236, %v228, 0
      %241 = vmatpush.msra.mxu0 0.0
      %242 = vmatpush.msra.mxu0 0.0
      %243 = vmatpush.msra.mxu0 0.0
      %244 = vmatpush.msra.mxu0 0.0
      %245 = vmatpush.msra.mxu0 0.0
      %246 = vmatpush.msra.mxu0 0.0
      %247 = vmatpush.msra.mxu0 0.0
      %248 = vmatpush.msra.mxu0 0.0
      %249 = vmatpush.msra.mxu0 0.0
      %250 = vmatpush.msra.mxu0 0.0
      %251 = vmatpush.msra.mxu0 0.0
      %252 = vmatpush.msra.mxu0 0.0
      %253 = vmatpush.msra.mxu0 0.0
      %254 = vmatpush.msra.mxu0 0.0
      %255 = vmatpush.msra.mxu0 0.0
      %256 = vmatpush.msra.mxu0 %v237
      %257 = vmatmul.f32.gmra.mxu0 %v231
      %v258 = vpop.f32.mrf.mxu0
      %v259 = vadd.f32 %v218, %v258
      %260 = vmatmul.f32.gmra.mxu0 %v234
      %v261 = vpop.f32.mrf.mxu0
      %v262 = vadd.f32 %v223, %v261
      %263 = vdwg.mxu0
      %264 = vmatpush.msra.mxu0 0.0
      %265 = vmatpush.msra.mxu0 0.0
      %266 = vmatpush.msra.mxu0 0.0
      %267 = vmatpush.msra.mxu0 0.0
      %268 = vmatpush.msra.mxu0 0.0
      %269 = vmatpush.msra.mxu0 0.0
      %270 = vmatpush.msra.mxu0 0.0
      %271 = vmatpush.msra.mxu0 0.0
      %272 = vmatpush.msra.mxu0 0.0
      %273 = vmatpush.msra.mxu0 0.0
      %274 = vmatpush.msra.mxu0 0.0
      %275 = vmatpush.msra.mxu0 0.0
      %276 = vmatpush.msra.mxu0 0.0
      %277 = vmatpush.msra.mxu0 0.0
      %278 = vmatpush.msra.mxu0 0.0
      %279 = vmatpush.msra.mxu0 %v239
      %280 = vmatmul.f32.gmra.mxu0 %v231
      %v281 = vpop.f32.mrf.mxu0
      %v282 = vadd.f32 %v218, %v281
      %283 = vmatmul.f32.gmra.mxu0 %v234
      %v284 = vpop.f32.mrf.mxu0
      %v285 = vadd.f32 %v223, %v284
      %286 = vdwg.mxu0
      %v287 = vxor.u32 %v262, 2147483648
      %v288 = vxor.u32 %v285, 2147483648
      %v289 = vmul.f32 %v287, 1.442695
      %v290 = vpow.pop %v289
      %v291 = vmul.f32 %v288, 1.442695
      %v292 = vpow.pop %v291
      %v293 = vadd.f32 %v290, 1.0
      %v294 = vadd.f32 %v292, 1.0
      %v295 = vrcp.pop %v293
      %v296 = vmul.f32 %v293, %v295
      %v297 = vsub.f32 1.0, %v296
      %v298 = vmul.f32 %v295, %v297
      %v299 = vadd.f32 %v295, %v298
      %vm300 = vweird.f32 %v293
      %vm301 = vweird.f32 %v295
      %vm302 = vmor %vm300, %vm301
      %v303 = vsel %vm302, %v295, %v299
      %v304 = vand.u32 2147483647, %v293
      %vm305 = vcmp.eq.f32.partialorder %v304, 8.507059e+37
      %v306 = vand.u32 %v293, 2147483648
      %v307 = vor.u32 1.1754944e-38, %v306
      %v308 = vsel %vm305, %v307, %v303
      %v309 = vmul.f32 1.0, %v308
      %v310 = vrcp.pop %v294
      %v311 = vmul.f32 %v294, %v310
      %v312 = vsub.f32 1.0, %v311
      %v313 = vmul.f32 %v310, %v312
      %v314 = vadd.f32 %v310, %v313
      %vm315 = vweird.f32 %v294
      %vm316 = vweird.f32 %v310
      %vm317 = vmor %vm315, %vm316
      %v318 = vsel %vm317, %v310, %v314
      %v319 = vand.u32 2147483647, %v294
      %vm320 = vcmp.eq.f32.partialorder %v319, 8.507059e+37
      %v321 = vand.u32 %v294, 2147483648
      %v322 = vor.u32 1.1754944e-38, %v321
      %v323 = vsel %vm320, %v322, %v318
      %v324 = vmul.f32 1.0, %v323
      %v325 = vmul.f32 %v259, %v309
      %v326 = vmul.f32 %v282, %v324
      %327 = vst [vmem:[%s208] sm:$0xff] %v325
      %328 = vst [vmem:[%s208 + $0x8] sm:$0xff] %v326
      %s329 = smul.u32 2, %s19
      %p330 = scmp.lt.s32.totalorder %s18, 1
      %s331 = scalar_select %p330, %s18, 1
      %p332 = scmp.lt.s32.totalorder %s329, 1
      %s333 = scalar_select %p332, %s329, 1
      %s334 = smul.addr %s331, 2
      %s335 = sadd.s32 %s333, %s334
      %s336 = smul.addr %s335, 8
      %s337 = scalar_lea.vmem %s3, %s336
      // Predicated region
      $region33: #{nn_glu_forward.1} parent=31 // pred_check
        %p338 = pneg %p116
      $region34: #{nn_glu_forward.1} parent=31 // pred_check_branch
        %340 = sbr.rel (%p338) target = $region36
      $region35: #{nn_glu_forward.1} parent=31 // pred_region
        %s341 = smul.u32 2, %s19
      $region36: #{nn_glu_forward.1} parent=31 // pred_fallthru
        _
    $region32: #{nn_glu_forward.1} parent=5 // pred_fallthru
      _
    %p342 = scmp.le.s32.totalorder 2, %s9
    // Predicated region
    $region37: #{nn_glu_forward.1} parent=5 // pred_check
      %p343 = pneg %p342
    $region38: #{nn_glu_forward.1} parent=5 // pred_check_branch
      %345 = sbr.rel (%p343) target = $region40
    $region39: #{nn_glu_forward.1} parent=5 // pred_region
      %s346 = ssub.s32 %s9, 2
      // Predicated region
      $region41: #{nn_glu_forward.1} parent=39 // pred_check
        %p347 = pneg %p122
      $region42: #{nn_glu_forward.1} parent=39 // pred_check_branch
        %349 = sbr.rel (%p347) target = $region44
      $region43: #{nn_glu_forward.1} parent=39 // pred_region
        %s350 = smul.u32 2, %s21
        %p351 = scmp.lt.s32.totalorder %s20, 1
        %s352 = scalar_select %p351, %s20, 1
        %p353 = scmp.lt.s32.totalorder %s350, 1
        %s354 = scalar_select %p353, %s350, 1
        %s355 = smul.addr %s352, 2
        %s356 = sadd.s32 %s354, %s355
        %s357 = smul.addr %s356, 8
        %s358 = scalar_lea.vmem %s3, %s357
      $region44: #{nn_glu_forward.1} parent=39 // pred_fallthru
        _
    $region40: #{nn_glu_forward.1} parent=5 // pred_fallthru
      _
  $region6: #{nn_glu_forward.1} parent=0 // loop_footer
    %s13 = sadd.s32 1, %s9
  $region7: #{nn_glu_forward.1} parent=0 // loop_footer_branch
    %8 = sbr.rel target = $region3
  $region8: #{nn_glu_forward.1} parent=0 // loop_exit
    _

</llo_original>
